<compile_context>
chip_gen: v5e
topology: v5e:2x2
jax: 0.10.0
libtpu: 0.0.40
codegen_flags: <defaults>
</compile_context>

<pallas_src>
import functools
import math

import jax
import jax.numpy as jnp
from jax.experimental import pallas as pl
from jax.experimental.pallas import tpu as pltpu

SCALE = 16.0
MARGIN = 0.1
_NEG_INF = -1e30


def _round_up(x, m):
    return (x + m - 1) // m * m


def _arcface_kernel(x_ref, t_ref, loss_ref, m_sc, l_sc, cos_sc,
                    *, b_actual, c_actual, scale, margin):
    bi = pl.program_id(0)
    cj = pl.program_id(1)
    n_c = pl.num_programs(1)

    @pl.when(cj == 0)
    def _init():
        m_sc[...] = jnp.full_like(m_sc, _NEG_INF)
        l_sc[...] = jnp.zeros_like(l_sc)
        cos_sc[...] = jnp.zeros_like(cos_sc)

    # ---- hot per-tile loop: select, scale, max, exp, two reductions ----
    x = x_ref[...].astype(jnp.float32)                       # (Bt, Ct)
    t = t_ref[...]                                            # (Bt, 1) int32
    bt, ct = x.shape

    col = jax.lax.broadcasted_iota(jnp.int32, (bt, ct), 1) + cj * ct
    valid_col = col < c_actual
    onehot = jnp.logical_and(col == t, valid_col)

    # Accumulate the (unscaled) target-class cosine; exactly one class tile
    # contributes per row.
    cos_sc[...] += jnp.sum(jnp.where(onehot, x, 0.0), axis=1, keepdims=True)

    # Streaming logsumexp over the raw scaled logits (padded cols masked).
    logits = jnp.where(valid_col, x * scale, _NEG_INF)
    m_prev = m_sc[...]
    m_new = jnp.maximum(m_prev, jnp.max(logits, axis=1, keepdims=True))
    l_sc[...] = (l_sc[...] * jnp.exp(m_prev - m_new)
                 + jnp.sum(jnp.exp(logits - m_new), axis=1, keepdims=True))
    m_sc[...] = m_new

    # ---- finalize: margin correction + CE, once per batch block ----
    @pl.when(cj == n_c - 1)
    def _finalize():
        cos_m = math.cos(margin)
        sin_m = math.sin(margin)
        cos_pi_m = math.cos(math.pi - margin)
        sin_pi_m = math.sin(math.pi - margin)

        cos_t = cos_sc[...]                                   # (Bt, 1)
        sin_t = jnp.sqrt(jnp.maximum(0.0, 1.0 - cos_t * cos_t))  # clamp: no NaN
        cos_t_add_m = cos_t * cos_m - sin_t * sin_m
        keep = cos_t - sin_pi_m * margin
        new_t = jnp.where((cos_t - cos_pi_m) > 0.0, cos_t_add_m, keep)

        s_cos = scale * cos_t
        s_new = scale * new_t                                 # replaced target logit
        m = m_sc[...]
        l = l_sc[...]
        big = jnp.maximum(m, s_new)
        # logsumexp with exp(s*cos_t) swapped for exp(s*new_t).
        corrected = (l * jnp.exp(m - big)
                     - jnp.exp(s_cos - big)
                     + jnp.exp(s_new - big))
        lse = big + jnp.log(corrected)
        per_row = lse - s_new                                 # CE per valid row

        row = jax.lax.broadcasted_iota(jnp.int32, per_row.shape, 0) + bi * bt
        loss_ref[...] = jnp.where(row < b_actual, per_row, 0.0)


def arcface_loss(inputs, targets, *, scale=SCALE, margin=MARGIN,
                 b_tile=128, c_tile=2048):
    """inputs: (B, C) float (f32/bf16), targets: (B,) int -> scalar f32 mean CE.

    Default tiles (b_tile=128, c_tile=2048, f32) keep the double-buffered input
    well under the 32 MiB scoped-VMEM default and the 64 MiB physical VMEM of
    v7x; on v5e/v6e (128 MiB) c_tile can be raised to 4096-8192.
    """
    B, C = inputs.shape
    c_tile = min(c_tile, _round_up(C, 128))
    b_tile = _round_up(min(b_tile, _round_up(B, 8)), 8)
    Cp = _round_up(C, c_tile)
    Bp = _round_up(B, b_tile)

    x = inputs
    if (Bp, Cp) != (B, C):
        x = jnp.pad(x, ((0, Bp - B), (0, Cp - C)))
    t = targets.astype(jnp.int32).reshape(B, 1)
    if Bp != B:
        t = jnp.pad(t, ((0, Bp - B), (0, 0)))

    grid = (Bp // b_tile, Cp // c_tile)
    itemsize = jnp.dtype(x.dtype).itemsize
    tile_bytes = b_tile * c_tile * max(itemsize, 4)
    vmem_limit = int(min(48 * 2**20, max(16 * 2**20, 10 * tile_bytes)))

    kernel = functools.partial(
        _arcface_kernel, b_actual=B, c_actual=C, scale=scale, margin=margin)

    per_row = pl.pallas_call(
        kernel,
        out_shape=jax.ShapeDtypeStruct((Bp, 1), jnp.float32),
        grid_spec=pltpu.PrefetchScalarGridSpec(
            num_scalar_prefetch=0,
            grid=grid,
            in_specs=[
                pl.BlockSpec((b_tile, c_tile), lambda bi, cj: (bi, cj)),
                pl.BlockSpec((b_tile, 1), lambda bi, cj: (bi, 0)),
            ],
            out_specs=pl.BlockSpec((b_tile, 1), lambda bi, cj: (bi, 0)),
            scratch_shapes=[pltpu.VMEM((b_tile, 1), jnp.float32)] * 3,
        ),
        compiler_params=pltpu.CompilerParams(
            dimension_semantics=("parallel", "arbitrary"),
            vmem_limit_bytes=vmem_limit,
        ),
        cost_estimate=pl.CostEstimate(
            flops=6 * Bp * Cp,
            transcendentals=Bp * Cp,
            bytes_accessed=Bp * Cp * itemsize + 2 * Bp * 4,
        ),
    )(x, t)

    return jnp.sum(per_row) / B


def arcface_loss_ref(inputs, targets, *, scale=SCALE, margin=MARGIN):
    """Pure-JAX reference mirroring the PyTorch forward."""
    B, C = inputs.shape
    x = inputs.astype(jnp.float32)
    onehot = jax.nn.one_hot(targets, C, dtype=bool)
    cos_t = jnp.sum(jnp.where(onehot, x, 0.0), axis=1)
    sin_t = jnp.sqrt(jnp.maximum(0.0, 1.0 - cos_t * cos_t))
    phi = cos_t * math.cos(margin) - sin_t * math.sin(margin)
    cond = (cos_t - math.cos(math.pi - margin)) > 0.0
    keep = cos_t - math.sin(math.pi - margin) * margin
    new_t = jnp.where(cond, phi, keep)
    out = jnp.where(onehot, new_t[:, None], x) * scale
    logp = jax.nn.log_softmax(out, axis=1)
    return -jnp.mean(jnp.sum(jnp.where(onehot, logp, 0.0), axis=1))


if __name__ == "__main__":
    key = jax.random.PRNGKey(0)

    # Case 1: small shape matching the module spec (single tile after padding).
    k1, k2, k3, k4 = jax.random.split(key, 4)
    B1, C1 = 8, 32
    x1 = jax.random.uniform(k1, (B1, C1), jnp.float32, minval=-1.0, maxval=1.0)
    t1 = jax.random.randint(k2, (B1,), 0, C1, dtype=jnp.int32)
    loss1 = arcface_loss(x1, t1)
    jax.block_until_ready(loss1)
    ref1 = arcface_loss_ref(x1, t1)
    assert jnp.allclose(loss1, ref1, rtol=1e-5, atol=1e-5), (loss1, ref1)

    # Case 2: exercises the streaming path (multiple class tiles + padding)
    # and multiple batch blocks (parallel batch axis).
    B2, C2 = 24, 300
    x2 = jax.random.uniform(k3, (B2, C2), jnp.float32, minval=-1.0, maxval=1.0)
    t2 = jax.random.randint(k4, (B2,), 0, C2, dtype=jnp.int32)
    loss2 = arcface_loss(x2, t2, b_tile=8, c_tile=128)
    jax.block_until_ready(loss2)
    ref2 = arcface_loss_ref(x2, t2)
    assert jnp.allclose(loss2, ref2, rtol=1e-5, atol=1e-5), (loss2, ref2)

    print("KERNEL_OK")
</pallas_src>

<mosaic_0001>
module attributes {stable_mosaic.version = 11 : i64} {
  func.func @_arcface_kernel(%arg0: i32, %arg1: i32, %arg2: memref<8x128xf32, #tpu.memory_space<vmem>>, %arg3: memref<8x1xi32, #tpu.memory_space<vmem>>, %arg4: memref<8x1xf32, #tpu.memory_space<vmem>>, %arg5: memref<8x1xf32, #tpu.memory_space<vmem>>, %arg6: memref<8x1xf32, #tpu.memory_space<vmem>>, %arg7: memref<8x1xf32, #tpu.memory_space<vmem>>) attributes {dimension_semantics = [#tpu.dimension_semantics<parallel>, #tpu.dimension_semantics<arbitrary>], iteration_bounds = array<i64: 1, 1>, scalar_prefetch = 0 : i64, scratch_operands = 3 : i64, tpu.core_type = #tpu.core_type<tc>, window_params = [{transform_indices = @transform_0, window_bounds = array<i64: 8, 128>}, {transform_indices = @transform_1, window_bounds = array<i64: 8, 1>}, {transform_indices = @transform_2, window_bounds = array<i64: 8, 1>}]} {
    %c0_i32 = arith.constant 0 : i32
    %0 = arith.cmpi eq, %arg1, %c0_i32 : i32
    %1 = arith.extui %0 : i1 to i32
    %c0_i32_0 = arith.constant 0 : i32
    %2 = arith.cmpi ne, %1, %c0_i32_0 : i32
    scf.if %2 {
      %cst_23 = arith.constant -1.000000e+30 : f32
      %44 = vector.broadcast %cst_23 : f32 to vector<8x1xf32>
      %c0_24 = arith.constant 0 : index
      %c0_25 = arith.constant 0 : index
      %45 = vector.load %arg5[%c0_24, %c0_25] : memref<8x1xf32, #tpu.memory_space<vmem>>, vector<8x1xf32>
      tpu.vector_store %arg5[%c0_24, %c0_25], %44 {strides = array<i32>} : memref<8x1xf32, #tpu.memory_space<vmem>>, vector<8x1xf32>,
      %cst_26 = arith.constant 0.000000e+00 : f32
      %46 = vector.broadcast %cst_26 : f32 to vector<8x1xf32>
      %c0_27 = arith.constant 0 : index
      %c0_28 = arith.constant 0 : index
      %47 = vector.load %arg6[%c0_27, %c0_28] : memref<8x1xf32, #tpu.memory_space<vmem>>, vector<8x1xf32>
      tpu.vector_store %arg6[%c0_27, %c0_28], %46 {strides = array<i32>} : memref<8x1xf32, #tpu.memory_space<vmem>>, vector<8x1xf32>,
      %cst_29 = arith.constant 0.000000e+00 : f32
      %48 = vector.broadcast %cst_29 : f32 to vector<8x1xf32>
      %c0_30 = arith.constant 0 : index
      %c0_31 = arith.constant 0 : index
      %49 = vector.load %arg7[%c0_30, %c0_31] : memref<8x1xf32, #tpu.memory_space<vmem>>, vector<8x1xf32>
      tpu.vector_store %arg7[%c0_30, %c0_31], %48 {strides = array<i32>} : memref<8x1xf32, #tpu.memory_space<vmem>>, vector<8x1xf32>,
    } else {
    }
    %c0 = arith.constant 0 : index
    %c0_1 = arith.constant 0 : index
    %3 = vector.load %arg2[%c0, %c0_1] : memref<8x128xf32, #tpu.memory_space<vmem>>, vector<8x128xf32>
    %c0_2 = arith.constant 0 : index
    %c0_3 = arith.constant 0 : index
    %4 = vector.load %arg3[%c0_2, %c0_3] : memref<8x1xi32, #tpu.memory_space<vmem>>, vector<8x1xi32>
    %5 = tpu.iota {dimensions = array<i32: 1>} : vector<8x128xi32>
    %c128_i32 = arith.constant 128 : i32
    %6 = arith.muli %arg1, %c128_i32 : i32
    %7 = vector.broadcast %6 : i32 to vector<8x128xi32>
    %8 = arith.addi %5, %7 : vector<8x128xi32>
    %c32_i32 = arith.constant 32 : i32
    %9 = vector.broadcast %c32_i32 : i32 to vector<8x128xi32>
    %10 = arith.cmpi slt, %8, %9 : vector<8x128xi32>
    %11 = vector.broadcast %4 : vector<8x1xi32> to vector<8x128xi32>
    %12 = arith.cmpi eq, %8, %11 : vector<8x128xi32>
    %13 = arith.andi %12, %10 : vector<8x128xi1>
    %c0_4 = arith.constant 0 : index
    %c0_5 = arith.constant 0 : index
    %14 = vector.load %arg7[%c0_4, %c0_5] : memref<8x1xf32, #tpu.memory_space<vmem>>, vector<8x1xf32>
    %cst = arith.constant 0.000000e+00 : f32
    %15 = vector.broadcast %cst : f32 to vector<8x128xf32>
    %16 = arith.select %13, %3, %15 : vector<8x128xi1>, vector<8x128xf32>
    %cst_6 = arith.constant dense<0.000000e+00> : vector<8xf32>
    %17 = vector.multi_reduction <add>, %16, %cst_6 [1] : vector<8x128xf32> to vector<8xf32>
    %18 = vector.shape_cast %17 : vector<8xf32> to vector<8x1xf32>
    %19 = arith.addf %14, %18 : vector<8x1xf32>
    %c0_7 = arith.constant 0 : index
    %c0_8 = arith.constant 0 : index
    %20 = vector.load %arg7[%c0_7, %c0_8] : memref<8x1xf32, #tpu.memory_space<vmem>>, vector<8x1xf32>
    tpu.vector_store %arg7[%c0_7, %c0_8], %19 {strides = array<i32>} : memref<8x1xf32, #tpu.memory_space<vmem>>, vector<8x1xf32>,
    %cst_9 = arith.constant 1.600000e+01 : f32
    %21 = vector.broadcast %cst_9 : f32 to vector<8x128xf32>
    %22 = arith.mulf %3, %21 : vector<8x128xf32>
    %cst_10 = arith.constant -1.000000e+30 : f32
    %23 = vector.broadcast %cst_10 : f32 to vector<8x128xf32>
    %24 = arith.select %10, %22, %23 : vector<8x128xi1>, vector<8x128xf32>
    %c0_11 = arith.constant 0 : index
    %c0_12 = arith.constant 0 : index
    %25 = vector.load %arg5[%c0_11, %c0_12] : memref<8x1xf32, #tpu.memory_space<vmem>>, vector<8x1xf32>
    %cst_13 = arith.constant dense<0xFF800000> : vector<8xf32>
    %26 = vector.multi_reduction <maximumf>, %24, %cst_13 [1] : vector<8x128xf32> to vector<8xf32>
    %27 = vector.shape_cast %26 : vector<8xf32> to vector<8x1xf32>
    %28 = arith.maximumf %25, %27 : vector<8x1xf32>
    %c0_14 = arith.constant 0 : index
    %c0_15 = arith.constant 0 : index
    %29 = vector.load %arg6[%c0_14, %c0_15] : memref<8x1xf32, #tpu.memory_space<vmem>>, vector<8x1xf32>
    %30 = arith.subf %25, %28 : vector<8x1xf32>
    %31 = math.exp %30 : vector<8x1xf32>
    %32 = arith.mulf %29, %31 : vector<8x1xf32>
    %33 = vector.broadcast %28 : vector<8x1xf32> to vector<8x128xf32>
    %34 = arith.subf %24, %33 : vector<8x128xf32>
    %35 = math.exp %34 : vector<8x128xf32>
    %cst_16 = arith.constant dense<0.000000e+00> : vector<8xf32>
    %36 = vector.multi_reduction <add>, %35, %cst_16 [1] : vector<8x128xf32> to vector<8xf32>
    %37 = vector.shape_cast %36 : vector<8xf32> to vector<8x1xf32>
    %38 = arith.addf %32, %37 : vector<8x1xf32>
    %c0_17 = arith.constant 0 : index
    %c0_18 = arith.constant 0 : index
    %39 = vector.load %arg6[%c0_17, %c0_18] : memref<8x1xf32, #tpu.memory_space<vmem>>, vector<8x1xf32>
    tpu.vector_store %arg6[%c0_17, %c0_18], %38 {strides = array<i32>} : memref<8x1xf32, #tpu.memory_space<vmem>>, vector<8x1xf32>,
    %c0_19 = arith.constant 0 : index
    %c0_20 = arith.constant 0 : index
    %40 = vector.load %arg5[%c0_19, %c0_20] : memref<8x1xf32, #tpu.memory_space<vmem>>, vector<8x1xf32>
    tpu.vector_store %arg5[%c0_19, %c0_20], %28 {strides = array<i32>} : memref<8x1xf32, #tpu.memory_space<vmem>>, vector<8x1xf32>,
    %c0_i32_21 = arith.constant 0 : i32
    %41 = arith.cmpi eq, %arg1, %c0_i32_21 : i32
    %42 = arith.extui %41 : i1 to i32
    %c0_i32_22 = arith.constant 0 : i32
    %43 = arith.cmpi ne, %42, %c0_i32_22 : i32
    scf.if %43 {
      %c0_23 = arith.constant 0 : index
      %c0_24 = arith.constant 0 : index
      %44 = vector.load %arg7[%c0_23, %c0_24] : memref<8x1xf32, #tpu.memory_space<vmem>>, vector<8x1xf32>
      %45 = arith.mulf %44, %44 : vector<8x1xf32>
      %cst_25 = arith.constant 1.000000e+00 : f32
      %46 = vector.broadcast %cst_25 : f32 to vector<8x1xf32>
      %47 = arith.subf %46, %45 : vector<8x1xf32>
      %cst_26 = arith.constant 0.000000e+00 : f32
      %48 = vector.broadcast %cst_26 : f32 to vector<8x1xf32>
      %49 = arith.maximumf %48, %47 : vector<8x1xf32>
      %50 = math.sqrt %49 : vector<8x1xf32>
      %cst_27 = arith.constant 0.995004177 : f32
      %51 = vector.broadcast %cst_27 : f32 to vector<8x1xf32>
      %52 = arith.mulf %44, %51 : vector<8x1xf32>
      %cst_28 = arith.constant 0.0998334139 : f32
      %53 = vector.broadcast %cst_28 : f32 to vector<8x1xf32>
      %54 = arith.mulf %50, %53 : vector<8x1xf32>
      %55 = arith.subf %52, %54 : vector<8x1xf32>
      %cst_29 = arith.constant 0.0099833412 : f32
      %56 = vector.broadcast %cst_29 : f32 to vector<8x1xf32>
      %57 = arith.subf %44, %56 : vector<8x1xf32>
      %cst_30 = arith.constant -0.995004177 : f32
      %58 = vector.broadcast %cst_30 : f32 to vector<8x1xf32>
      %59 = arith.subf %44, %58 : vector<8x1xf32>
      %cst_31 = arith.constant 0.000000e+00 : f32
      %60 = vector.broadcast %cst_31 : f32 to vector<8x1xf32>
      %61 = arith.cmpf ogt, %59, %60 : vector<8x1xf32>
      %62 = arith.select %61, %55, %57 : vector<8x1xi1>, vector<8x1xf32>
      %cst_32 = arith.constant 1.600000e+01 : f32
      %63 = vector.broadcast %cst_32 : f32 to vector<8x1xf32>
      %64 = arith.mulf %63, %44 : vector<8x1xf32>
      %cst_33 = arith.constant 1.600000e+01 : f32
      %65 = vector.broadcast %cst_33 : f32 to vector<8x1xf32>
      %66 = arith.mulf %65, %62 : vector<8x1xf32>
      %c0_34 = arith.constant 0 : index
      %c0_35 = arith.constant 0 : index
      %67 = vector.load %arg5[%c0_34, %c0_35] : memref<8x1xf32, #tpu.memory_space<vmem>>, vector<8x1xf32>
      %c0_36 = arith.constant 0 : index
      %c0_37 = arith.constant 0 : index
      %68 = vector.load %arg6[%c0_36, %c0_37] : memref<8x1xf32, #tpu.memory_space<vmem>>, vector<8x1xf32>
      %69 = arith.maximumf %67, %66 : vector<8x1xf32>
      %70 = arith.subf %67, %69 : vector<8x1xf32>
      %71 = math.exp %70 : vector<8x1xf32>
      %72 = arith.mulf %68, %71 : vector<8x1xf32>
      %73 = arith.subf %64, %69 : vector<8x1xf32>
      %74 = math.exp %73 : vector<8x1xf32>
      %75 = arith.subf %72, %74 : vector<8x1xf32>
      %76 = arith.subf %66, %69 : vector<8x1xf32>
      %77 = math.exp %76 : vector<8x1xf32>
      %78 = arith.addf %75, %77 : vector<8x1xf32>
      %79 = math.log %78 : vector<8x1xf32>
      %80 = arith.addf %69, %79 : vector<8x1xf32>
      %81 = arith.subf %80, %66 : vector<8x1xf32>
      %82 = tpu.iota {dimensions = array<i32: 0>} : vector<8x1xi32>
      %c8_i32 = arith.constant 8 : i32
      %83 = arith.muli %arg0, %c8_i32 : i32
      %84 = vector.broadcast %83 : i32 to vector<8x1xi32>
      %85 = arith.addi %82, %84 : vector<8x1xi32>
      %c8_i32_38 = arith.constant 8 : i32
      %86 = vector.broadcast %c8_i32_38 : i32 to vector<8x1xi32>
      %87 = arith.cmpi slt, %85, %86 : vector<8x1xi32>
      %cst_39 = arith.constant 0.000000e+00 : f32
      %88 = vector.broadcast %cst_39 : f32 to vector<8x1xf32>
      %89 = arith.select %87, %81, %88 : vector<8x1xi1>, vector<8x1xf32>
      %c0_40 = arith.constant 0 : index
      %c0_41 = arith.constant 0 : index
      %90 = vector.load %arg4[%c0_40, %c0_41] : memref<8x1xf32, #tpu.memory_space<vmem>>, vector<8x1xf32>
      tpu.vector_store %arg4[%c0_40, %c0_41], %89 {strides = array<i32>} : memref<8x1xf32, #tpu.memory_space<vmem>>, vector<8x1xf32>,
    } else {
    }
    return
  }
  func.func @transform_0(%arg0: i32, %arg1: i32) -> (i32, i32) {
    %c0_i32 = arith.constant 0 : i32
    return %arg0, %arg1 : i32, i32
  }
  func.func @transform_1(%arg0: i32, %arg1: i32) -> (i32, i32) {
    %c0_i32 = arith.constant 0 : i32
    %c0_i32_0 = arith.constant 0 : i32
    return %arg0, %c0_i32 : i32, i32
  }
  func.func @transform_2(%arg0: i32, %arg1: i32) -> (i32, i32) {
    %c0_i32 = arith.constant 0 : i32
    %c0_i32_0 = arith.constant 0 : i32
    return %arg0, %c0_i32 : i32, i32
  }
}

</mosaic_0001>

<llo_original>
// kernel: tpu_custom_call.1
$region0: #{tpu_custom_call.1}
  #allocation0 [shape = 'u32[]', space=smem, size = 0x4, offset = 0x4, fixed_abs, tag = 'smem constant byte address 0x4 - core index']
  #allocation1 [shape = 'u32[72,128]{1,0:T(1,128)}', space=vmem, size = 0x9000, scoped, tag = 'internal scratch']
  #allocation2 [shape = 'f32[8,1]{1,0:T(8,128)}', space=vmem, size = 0x1000, scoped, tag = 'scratch operand']
  #allocation3 [shape = 'f32[8,1]{1,0:T(8,128)}', space=vmem, size = 0x1000, scoped, tag = 'scratch operand']
  #allocation4 [shape = 'f32[8,1]{1,0:T(8,128)}', space=vmem, size = 0x1000, scoped, tag = 'scratch operand']
  %s0 = inlined_call_operand.vmem [shape: f32[8,128], index: 0, kind: input, shape index: {}]
  %s1 = inlined_call_operand.vmem [shape: s32[8,1], index: 1, kind: input, shape index: {}]
  %s2 = inlined_call_operand.vmem [shape: f32[8,1], index: 2, kind: output, shape index: {}]
  %s3 = sld [smem:[#allocation0]]
  $region26: #{tpu_custom_call.1} parent=0
    _
  %s5 = ssub.s32 1, %s3
  %s6 = scalar_select 0, %s5, %s3
  // Predicated region
  $region2: #{tpu_custom_call.1} parent=0 // pred_check
    _
  $region3: #{tpu_custom_call.1} parent=0 // pred_check_branch
    %8 = sbr.rel (0) target = $region5
  $region4: #{tpu_custom_call.1} parent=0 // pred_region
    _
  $region5: #{tpu_custom_call.1} parent=0 // pred_fallthru
    _
  // Predicated region
  $region6: #{tpu_custom_call.1} parent=0 // pred_check
    _
  $region7: #{tpu_custom_call.1} parent=0 // pred_check_branch
    %10 = sbr.rel (0) target = $region9
  $region8: #{tpu_custom_call.1} parent=0 // pred_region
    _
  $region9: #{tpu_custom_call.1} parent=0 // pred_fallthru
    _
  %p11 = scmp.eq.s32.totalorder 0, 0
  // Predicated region
  $region10: #{tpu_custom_call.1} parent=0 // pred_check
    %p12 = pneg %p11
  $region11: #{tpu_custom_call.1} parent=0 // pred_check_branch
    %14 = sbr.rel (%p12) target = $region13
  $region12: #{tpu_custom_call.1} parent=0 // pred_region
    %vm15 = vcmask 7168
    %16 = vst.msk [vmem:[#allocation2] sm:$0xff] %vm15, -1e+30
    %17 = vst.msk [vmem:[#allocation3] sm:$0xff] %vm15, 0.0
    %18 = vst.msk [vmem:[#allocation4] sm:$0xff] %vm15, 0.0
  $region13: #{tpu_custom_call.1} parent=0 // pred_fallthru
    _
  %v19 = vld [vmem:[%s0] sm:$0xff]
  %v20 = vld [vmem:[%s1] sm:$0xff]
  %v21 = vlaneseq
  %v22 = vand.u32 %v21, 127
  %s23 = smul.u32 0, 128
  %v24 = vstv %s23
  %v25 = vadd.s32 %v22, %v24
  %vm26 = vcmp.lt.s32.totalorder %v25, 32
  %27 = vset.pattern.permute.xlu0 0
  %28 = vperm.xlu0 %27, %v20
  %v29 = vpop.permute.xlu0 %28
  %vm30 = vcmp.eq.s32.totalorder %v25, %v29
  %vm31 = vmand %vm30, %vm26
  %v32 = vld [vmem:[#allocation4] sm:$0xff]
  %v33 = vsel %vm31, %v19, 0.0
  %34 = vadd.xlane.f32.xlu0 %v33
  %v35 = vpop.xlane.xlu0 %34
  %v36 = vadd.f32 %v32, %v35
  %vm37 = vcmask 7168
  %38 = vst.msk [vmem:[#allocation4] sm:$0xff] %vm37, %v36
  %v39 = vmul.f32 %v19, 16.0
  %v40 = vsel %vm26, %v39, -1e+30
  %v41 = vld [vmem:[#allocation2] sm:$0xff]
  %42 = vmax.xlane.f32.xlu0 %v40
  %v43 = vpop.xlane.xlu0 %42
  %v44 = vmax.f32 %v41, %v43
  %v45 = vld [vmem:[#allocation3] sm:$0xff]
  %v46 = vsub.f32 %v41, %v44
  %v47 = vmul.f32 %v46, 1.442695
  %v48 = vpow.pop %v47
  %v49 = vmul.f32 %v45, %v48
  %51 = vset.pattern.permute.xlu0 0
  %52 = vperm.xlu0 %51, %v44
  %v53 = vpop.permute.xlu0 %52
  %v55 = vsub.f32 %v40, %v53
  %v56 = vmul.f32 %v55, 1.442695
  %v57 = vpow.pop %v56
  %58 = vadd.xlane.f32.xlu0 %v57
  %v59 = vpop.xlane.xlu0 %58
  %v60 = vadd.f32 %v49, %v59
  %61 = vst.msk [vmem:[#allocation3] sm:$0xff] %vm37, %v60
  %62 = vst.msk [vmem:[#allocation2] sm:$0xff] %vm37, %v44
  // Predicated region
  $region14: #{tpu_custom_call.1} parent=0 // pred_check
    %p63 = pneg %p11
  $region15: #{tpu_custom_call.1} parent=0 // pred_check_branch
    %65 = sbr.rel (%p63) target = $region17
  $region16: #{tpu_custom_call.1} parent=0 // pred_region
    %v66 = vld [vmem:[#allocation4] sm:$0xff]
    %v67 = vmul.f32 %v66, %v66
    %v68 = vsub.f32 1.0, %v67
    %v69 = vmax.f32 %v68, 0.0
    %v70 = vrsqrt.pop %v69
    %v71 = vmul.f32 %v70, %v69
    %v72 = vmul.f32 %v71, %v70
    %v73 = vmul.f32 0.5, %v72
    %v74 = vsub.f32 1.5, %v73
    %v75 = vmul.f32 %v70, %v74
    %v76 = vmul.f32 %v69, %v75
    %vm77 = vcmp.eq.f32.partialorder %v69, inf
    %v78 = vsel %vm77, %v69, %v76
    %vm79 = vcmp.eq.f32.partialorder %v69, 0.0
    %v80 = vand.u32 %v69, 2147483648
    %v81 = vsel %vm79, %v80, %v78
    %v82 = vmul.f32 %v66, 0.9950042
    %v83 = vmul.f32 %v81, 0.099833414
    %v84 = vsub.f32 %v82, %v83
    %v85 = vsub.f32 %v66, 0.009983341
    %v86 = vsub.f32 %v66, -0.9950042
    %vm87 = vcmp.gt.f32.partialorder %v86, 0.0
    %v88 = vsel %vm87, %v84, %v85
    %v89 = vmul.f32 %v66, 16.0
    %v90 = vmul.f32 %v88, 16.0
    %v91 = vld [vmem:[#allocation2] sm:$0xff]
    %v92 = vld [vmem:[#allocation3] sm:$0xff]
    %v93 = vmax.f32 %v91, %v90
    %v94 = vsub.f32 %v91, %v93
    %v95 = vmul.f32 %v94, 1.442695
    %v96 = vpow.pop %v95
    %v97 = vmul.f32 %v92, %v96
    %v98 = vsub.f32 %v89, %v93
    %v99 = vmul.f32 %v98, 1.442695
    %v100 = vpow.pop %v99
    %v101 = vsub.f32 %v97, %v100
    %v102 = vsub.f32 %v90, %v93
    %v103 = vmul.f32 %v102, 1.442695
    %v104 = vpow.pop %v103
    %v105 = vadd.f32 %v101, %v104
    %v106 = vlog2.pop %v105
    %v107 = vmul.f32 %v106, 0.6931472
    %v108 = vadd.f32 %v93, %v107
    %v109 = vsub.f32 %v108, %v90
    %v110 = vlaneseq
    %v111 = vshrl.u32 %v110, 7
    %s112 = smul.u32 0, 8
    %v113 = vstv %s112
    %v114 = vadd.s32 %v111, %v113
    %vm115 = vcmp.lt.s32.totalorder %v114, 8
    %v116 = vsel %vm115, %v109, 0.0
    %117 = vst.msk [vmem:[%s2] sm:$0xff] %vm37, %v116
  $region17: #{tpu_custom_call.1} parent=0 // pred_fallthru
    _
  // Predicated region
  $region18: #{tpu_custom_call.1} parent=0 // pred_check
    _
  $region19: #{tpu_custom_call.1} parent=0 // pred_check_branch
    %119 = sbr.rel (0) target = $region21
  $region20: #{tpu_custom_call.1} parent=0 // pred_region
    _
  $region21: #{tpu_custom_call.1} parent=0 // pred_fallthru
    _
  // Predicated region
  $region22: #{tpu_custom_call.1} parent=0 // pred_check
    _
  $region23: #{tpu_custom_call.1} parent=0 // pred_check_branch
    %121 = sbr.rel (0) target = $region25
  $region24: #{tpu_custom_call.1} parent=0 // pred_region
    _
  $region25: #{tpu_custom_call.1} parent=0 // pred_fallthru
    _

</llo_original>
